<compile_context>
chip_gen: v7x
topology: tpu7x:2x2x1
jax: 0.10.0
libtpu: 0.0.40
codegen_flags: <defaults>
</compile_context>

<pallas_src>
import functools

import jax
import jax.numpy as jnp
from jax.experimental import pallas as pl
from jax.experimental.pallas import tpu as pltpu

IN_FEATURES = 76
HIDDEN = 250
OUT_FEATURES = 1


def _round_up(n, m):
    return ((n + m - 1) // m) * m


def _bf16_elementwise_ok():
    """bf16 VPU/EUP arithmetic exists on v6e / v7x but not v5e (or older)."""
    try:
        kind = jax.devices()[0].device_kind.lower()
    except Exception:  # pragma: no cover - be permissive off-TPU
        return True
    for tag in ("v2", "v3", "v4", "v5"):
        if tag in kind:
            return False
    return True


def _discriminator_kernel(x_ref, w1_ref, b1_ref, w5_ref, b5_ref, o_ref, *, bf16_elem):
    # fc1 on the MXU: bf16 operands, f32 accumulation.  astype is a no-op if the
    # caller already feeds bf16 x.
    x_bf = x_ref[...].astype(jnp.bfloat16)
    h = jnp.dot(x_bf, w1_ref[...], preferred_element_type=jnp.float32)
    h = h + b1_ref[...]                       # bias add in f32 (cheap, accurate)

    if bf16_elem:
        # v6e / v7x: bf16 EUP tanh + bf16 VALU multiply; f32 lane-sum accumulate.
        h = jnp.tanh(h.astype(jnp.bfloat16))
        prod = h * w5_ref[...]                # w5 passed as bf16 on this path
        logit = jnp.sum(prod, axis=-1, keepdims=True, dtype=jnp.float32)
    else:
        # v5e: no bf16 VPU/EUP -- keep the elementwise path in f32.
        h = jnp.tanh(h)
        logit = jnp.sum(h * w5_ref[...], axis=-1, keepdims=True)

    logit = logit + b5_ref[...]
    o_ref[...] = jax.nn.sigmoid(logit).astype(o_ref.dtype)


def discriminator_forward(x, w1, b1, w5, b5, *, block_rows=2048):
    """x:  (B, 76)  float32 or bfloat16
       w1: (76, 250)  fc1 weight, pre-transposed to (in, out)
       b1: (250,)
       w5: (1, 250)   fc5 weight in PyTorch layout (any shape with 250 elements ok)
       b5: (1,)
       returns (B, 1) float32"""
    B = x.shape[0]
    bf16_elem = _bf16_elementwise_ok()

    # Tile the batch; sublane-aligned to 8, clamped to block_rows.
    tb = min(block_rows, _round_up(B, 8))
    if B >= 16:
        # Guarantee >= 2 grid steps so ("parallel",) can shard the batch across
        # both TensorCores on v7x; negligible extra step cost on 1-TC chips.
        tb = min(tb, _round_up(pl.cdiv(B, 2), 8))
    tb = max(tb, 8)
    grid = (pl.cdiv(B, tb),)

    elem_dtype = jnp.bfloat16 if bf16_elem else jnp.float32
    w1_bf16 = w1.astype(jnp.bfloat16)                        # MXU-native operand
    b1_row = b1.reshape(1, HIDDEN).astype(jnp.float32)
    w5_row = w5.reshape(1, HIDDEN).astype(elem_dtype)        # lane-dense fc5 row
    b5_sc = b5.reshape(1, 1).astype(jnp.float32)

    x_bytes = B * IN_FEATURES * x.dtype.itemsize
    weight_bytes = (w1_bf16.size * 2) + (b1_row.size * 4) \
        + (w5_row.size * w5_row.dtype.itemsize) + 4
    cost = pl.CostEstimate(
        flops=2 * B * IN_FEATURES * HIDDEN + 2 * B * HIDDEN,
        transcendentals=B * (HIDDEN + 1),                    # tanh + sigmoid
        bytes_accessed=x_bytes + B * OUT_FEATURES * 4 + weight_bytes,
    )

    kernel = functools.partial(_discriminator_kernel, bf16_elem=bf16_elem)

    return pl.pallas_call(
        kernel,
        out_shape=jax.ShapeDtypeStruct((B, OUT_FEATURES), jnp.float32),
        grid=grid,
        in_specs=[
            pl.BlockSpec((tb, IN_FEATURES), lambda i: (i, 0)),      # x: batch-tiled
            pl.BlockSpec((IN_FEATURES, HIDDEN), lambda i: (0, 0)),  # w1: resident
            pl.BlockSpec((1, HIDDEN), lambda i: (0, 0)),            # b1: resident
            pl.BlockSpec((1, HIDDEN), lambda i: (0, 0)),            # w5 row: resident
            pl.BlockSpec((1, 1), lambda i: (0, 0)),                 # b5: resident
        ],
        out_specs=pl.BlockSpec((tb, OUT_FEATURES), lambda i: (i, 0)),
        compiler_params=pltpu.CompilerParams(
            dimension_semantics=("parallel",),
        ),
        cost_estimate=cost,
    )(x, w1_bf16, b1_row, w5_row, b5_sc)


def init_params(key):
    """Deterministic init mimicking PyTorch nn.Linear defaults:
       U(-1/sqrt(fan_in), 1/sqrt(fan_in)) for both weight and bias."""
    k1, k2, k3, k4 = jax.random.split(key, 4)
    bound1 = 1.0 / (IN_FEATURES ** 0.5)
    bound5 = 1.0 / (HIDDEN ** 0.5)
    # fc1 weight stored already transposed: (in_features, out_features)
    w1 = jax.random.uniform(k1, (IN_FEATURES, HIDDEN), jnp.float32,
                            minval=-bound1, maxval=bound1)
    b1 = jax.random.uniform(k2, (HIDDEN,), jnp.float32,
                            minval=-bound1, maxval=bound1)
    # fc5 weight in PyTorch layout (out_features, in_features) = (1, 250)
    w5 = jax.random.uniform(k3, (OUT_FEATURES, HIDDEN), jnp.float32,
                            minval=-bound5, maxval=bound5)
    b5 = jax.random.uniform(k4, (OUT_FEATURES,), jnp.float32,
                            minval=-bound5, maxval=bound5)
    return w1, b1, w5, b5


if __name__ == "__main__":
    key = jax.random.PRNGKey(0)
    k_params, k_x = jax.random.split(key)

    w1, b1, w5, b5 = init_params(k_params)

    B = 16  # small batch for the self-test (kernel pays off at large B)
    x = jax.random.normal(k_x, (B, IN_FEATURES), dtype=jnp.float32)

    out = discriminator_forward(x, w1, b1, w5, b5)
    out = jax.block_until_ready(out)

    # Reference in plain JAX f32 (dropout == identity in eval mode).
    # Tolerance relaxed because the kernel uses bf16 MXU operands (f32 accumulate)
    # and, on v6e/v7x, a bf16 elementwise path with f32 reduction accumulation.
    ref = jax.nn.sigmoid(jnp.tanh(x @ w1 + b1) @ w5.reshape(HIDDEN, OUT_FEATURES) + b5)
    assert out.shape == (B, OUT_FEATURES)
    assert jnp.allclose(out, ref, atol=2e-2, rtol=2e-2), (
        f"max abs err {jnp.max(jnp.abs(out - ref))}")

    print("KERNEL_OK")
</pallas_src>

<mosaic_0001>
module attributes {stable_mosaic.version = 11 : i64} {
  func.func @_discriminator_kernel(%arg0: i32, %arg1: memref<8x76xf32, #tpu.memory_space<vmem>>, %arg2: memref<76x250xbf16, #tpu.memory_space<vmem>>, %arg3: memref<1x250xf32, #tpu.memory_space<vmem>>, %arg4: memref<1x250xbf16, #tpu.memory_space<vmem>>, %arg5: memref<1x1xf32, #tpu.memory_space<vmem>>, %arg6: memref<8x1xf32, #tpu.memory_space<vmem>>) attributes {dimension_semantics = [#tpu.dimension_semantics<parallel>], iteration_bounds = array<i64: 2>, scalar_prefetch = 0 : i64, scratch_operands = 0 : i64, tpu.core_type = #tpu.core_type<tc>, window_params = [{transform_indices = @transform_0, window_bounds = array<i64: 8, 76>}, {pipeline_mode = #tpu.pipeline_mode<synchronous>, transform_indices = @transform_1, window_bounds = array<i64: 76, 250>}, {pipeline_mode = #tpu.pipeline_mode<synchronous>, transform_indices = @transform_2, window_bounds = array<i64: 1, 250>}, {pipeline_mode = #tpu.pipeline_mode<synchronous>, transform_indices = @transform_3, window_bounds = array<i64: 1, 250>}, {pipeline_mode = #tpu.pipeline_mode<synchronous>, transform_indices = @transform_4, window_bounds = array<i64: 1, 1>}, {transform_indices = @transform_5, window_bounds = array<i64: 8, 1>}]} {
    %c0 = arith.constant 0 : index
    %c0_0 = arith.constant 0 : index
    %0 = vector.load %arg1[%c0, %c0_0] : memref<8x76xf32, #tpu.memory_space<vmem>>, vector<8x76xf32>
    %1 = arith.truncf %0 : vector<8x76xf32> to vector<8x76xbf16>
    %c0_1 = arith.constant 0 : index
    %c0_2 = arith.constant 0 : index
    %2 = vector.load %arg2[%c0_1, %c0_2] : memref<76x250xbf16, #tpu.memory_space<vmem>>, vector<76x250xbf16>
    %cst = arith.constant dense<0.000000e+00> : vector<8x250xf32>
    %3 = tpu.matmul %1, %2, %cst {dimension_numbers = #tpu.dot_dimension_numbers<[1], [0], [0], [1], [0, 0, 1, 1], [], []>} : vector<8x76xbf16>, vector<76x250xbf16>, vector<8x250xf32> -> vector<8x250xf32>
    %c0_3 = arith.constant 0 : index
    %c0_4 = arith.constant 0 : index
    %4 = vector.load %arg3[%c0_3, %c0_4] : memref<1x250xf32, #tpu.memory_space<vmem>>, vector<1x250xf32>
    %5 = vector.broadcast %4 : vector<1x250xf32> to vector<8x250xf32>
    %6 = arith.addf %3, %5 : vector<8x250xf32>
    %7 = arith.truncf %6 : vector<8x250xf32> to vector<8x250xbf16>
    %8 = math.tanh %7 : vector<8x250xbf16>
    %c0_5 = arith.constant 0 : index
    %c0_6 = arith.constant 0 : index
    %9 = vector.load %arg4[%c0_5, %c0_6] : memref<1x250xbf16, #tpu.memory_space<vmem>>, vector<1x250xbf16>
    %10 = vector.broadcast %9 : vector<1x250xbf16> to vector<8x250xbf16>
    %11 = arith.mulf %8, %10 : vector<8x250xbf16>
    %12 = arith.extf %11 : vector<8x250xbf16> to vector<8x250xf32>
    %cst_7 = arith.constant dense<0.000000e+00> : vector<8xf32>
    %13 = vector.multi_reduction <add>, %12, %cst_7 [1] : vector<8x250xf32> to vector<8xf32>
    %14 = vector.shape_cast %13 : vector<8xf32> to vector<8x1xf32>
    %c0_8 = arith.constant 0 : index
    %c0_9 = arith.constant 0 : index
    %15 = vector.load %arg5[%c0_8, %c0_9] : memref<1x1xf32, #tpu.memory_space<vmem>>, vector<1x1xf32>
    %16 = vector.broadcast %15 : vector<1x1xf32> to vector<8x1xf32>
    %17 = arith.addf %14, %16 : vector<8x1xf32>
    %18 = arith.negf %17 : vector<8x1xf32>
    %19 = math.exp %18 : vector<8x1xf32>
    %cst_10 = arith.constant 1.000000e+00 : f32
    %20 = vector.broadcast %cst_10 : f32 to vector<8x1xf32>
    %21 = arith.addf %20, %19 : vector<8x1xf32>
    %22 = arith.divf %20, %21 : vector<8x1xf32>
    %c0_11 = arith.constant 0 : index
    %c0_12 = arith.constant 0 : index
    %23 = vector.load %arg6[%c0_11, %c0_12] : memref<8x1xf32, #tpu.memory_space<vmem>>, vector<8x1xf32>
    tpu.vector_store %arg6[%c0_11, %c0_12], %22 {strides = array<i32>} : memref<8x1xf32, #tpu.memory_space<vmem>>, vector<8x1xf32>,
    return
  }
  func.func @transform_0(%arg0: i32) -> (i32, i32) {
    %c0_i32 = arith.constant 0 : i32
    %c0_i32_0 = arith.constant 0 : i32
    return %arg0, %c0_i32 : i32, i32
  }
  func.func @transform_1(%arg0: i32) -> (i32, i32) {
    %c0_i32 = arith.constant 0 : i32
    %c0_i32_0 = arith.constant 0 : i32
    %c0_i32_1 = arith.constant 0 : i32
    return %c0_i32, %c0_i32_0 : i32, i32
  }
  func.func @transform_2(%arg0: i32) -> (i32, i32) {
    %c0_i32 = arith.constant 0 : i32
    %c0_i32_0 = arith.constant 0 : i32
    %c0_i32_1 = arith.constant 0 : i32
    return %c0_i32, %c0_i32_0 : i32, i32
  }
  func.func @transform_3(%arg0: i32) -> (i32, i32) {
    %c0_i32 = arith.constant 0 : i32
    %c0_i32_0 = arith.constant 0 : i32
    %c0_i32_1 = arith.constant 0 : i32
    return %c0_i32, %c0_i32_0 : i32, i32
  }
  func.func @transform_4(%arg0: i32) -> (i32, i32) {
    %c0_i32 = arith.constant 0 : i32
    %c0_i32_0 = arith.constant 0 : i32
    %c0_i32_1 = arith.constant 0 : i32
    return %c0_i32, %c0_i32_0 : i32, i32
  }
  func.func @transform_5(%arg0: i32) -> (i32, i32) {
    %c0_i32 = arith.constant 0 : i32
    %c0_i32_0 = arith.constant 0 : i32
    return %arg0, %c0_i32 : i32, i32
  }
}

</mosaic_0001>

<llo_original>
// kernel: tpu_custom_call.1
$region0: #{tpu_custom_call.1}
  #allocation0 [shape = 'u32[]', space=smem, size = 0x4, offset = 0x4, fixed_abs, tag = 'smem constant byte address 0x4 - core index']
  #allocation1 [shape = 'u32[144,128]{1,0:T(1,128)}', space=vmem, size = 0x12000, scoped, tag = 'internal scratch']
  #allocation2 [shape = 'f32[1,1]{1,0:T(1,128)S(1)}', space=vmem, size = 0x200, scoped, tag = 'scoped memory for tpu_custom_call.1']
  %s0 = inlined_call_operand.hbm [shape: f32[16,76], index: 0, kind: input, shape index: {}]
  %s1 = inlined_call_operand.hbm [shape: bf16[76,250], index: 1, kind: input, shape index: {}]
  %s2 = inlined_call_operand.vmem [shape: f32[1,250], index: 2, kind: input, shape index: {}]
  %s3 = inlined_call_operand.vmem [shape: bf16[1,250], index: 3, kind: input, shape index: {}]
  %s4 = inlined_call_operand.<no memory space> [shape: f32[1,1], index: 4, kind: input, shape index: {}]
  %s5 = inlined_call_operand.vmem [shape: f32[16,1], index: 5, kind: output, shape index: {}]
  %s6 = sld [smem:[#allocation0]]
  $region61: #{tpu_custom_call.1} parent=0
    _
  %s8 = ssub.s32 1, %s6
  %s9 = scalar_select 0, %s8, %s6
  %v10 = vstv %s4
  %11 = vst [vmem:[#allocation2] sm:$0x1] %v10
  $region1: #{tpu_custom_call.1} parent=0
    #allocation3 [shape = 'u8[8192]{0}', space=vmem, size = 0x2000, scoped, tag = 'input window, operand 0']
    #allocation4 [shape = 's32[2]{0}', space=sflag, size = 0x8, scoped, tag = 'scoped memory for tpu_custom_call.1']
    #allocation5 [shape = 'u8[40960]{0}', space=vmem, size = 0xa000, scoped, tag = 'input window, operand 1, single buffered']
    #allocation6 [shape = 's32[1]{0}', space=sflag, size = 0x4, scoped, tag = 'scoped memory for tpu_custom_call.1']
    %12 = vsyncpa [#allocation4], 0
    %s13 = scalar_lea.sflag [#allocation4], 1
    %14 = vsyncpa %s13, 0
    %15 = vsyncpa [#allocation6], 0
    loop: start=0, step=1, limit=4
    $region2: #{tpu_custom_call.1} parent=1 // loop_pre_header
      _
    $region3: #{tpu_custom_call.1} parent=1 // loop_header
      %s17 = sphi 0, %s21
      %p18 = scmp.ge.s32.totalorder %s17, 4
      %s27 = sphi 0, %s29
      %s30 = sphi 0, %s27
      %s31 = sphi 0, %s30
      %s47 = sphi 0, %s31
      %s51 = sphi 0, %s51
      %s53 = sphi 0, %s51
      %s54 = sphi 0, %s53
      %s68 = sphi 0, %s54
      %s72 = sphi 0, %s72
      %s74 = sphi 0, %s72
      %s75 = sphi 0, %s74
      %s89 = sphi 0, %s75
      %s93 = sphi 0, %s93
      %s95 = sphi 0, %s93
      %s96 = sphi 0, %s95
      %s110 = sphi 0, %s96
      %s114 = sphi 0, %s114
      %s116 = sphi 0, %s114
      %s117 = sphi 0, %s116
      %s131 = sphi 0, %s117
      %s137 = sphi 0, %s139
      %s140 = sphi 0, %s137
      %s141 = sphi 0, %s140
      %s157 = sphi 0, %s141
    $region4: #{tpu_custom_call.1} parent=1 // loop_header_branch
      %20 = sbr.rel (%p18) target = $region8
    $region5: #{tpu_custom_call.1} parent=1 // loop_body
      %s22 = ssub.s32 %s17, 1
      %s23 = ssub.s32 %s17, 2
      %s24 = sadd.s32 %s17, 1
      %s25 = ssub.s32 %s17, %s24
      %p26 = scmp.eq.s32.totalorder %s25, 0
      %s28 = sadd.s32 %s27, 1
      %s29 = scalar_select %p26, %s27, %s28
      %p32 = pneg %p26
      %p33 = scmp.eq.s32.totalorder %s17, 1
      %p34 = por %p32, %p33
      %p35 = scmp.ne.s32.totalorder %s27, %s30
      %p36 = scmp.eq.s32.totalorder %s17, 0
      %p37 = por %p35, %p36
      %p38 = scmp.ne.s32.totalorder %s27, %s30
      %p39 = scmp.eq.s32.totalorder %s22, 1
      %p40 = por %p38, %p39
      %p41 = scmp.ne.s32.totalorder %s30, %s31
      %p42 = scmp.eq.s32.totalorder %s22, 0
      %p43 = por %p41, %p42
      %p44 = scmp.ne.s32.totalorder %s30, %s31
      %p45 = scmp.eq.s32.totalorder %s23, 1
      %p46 = por %p44, %p45
      %p48 = scmp.ne.s32.totalorder %s31, %s47
      %p49 = scmp.eq.s32.totalorder %s23, 0
      %p50 = por %p48, %p49
      %s52 = sadd.s32 %s51, 1
      %p55 = scmp.eq.s32.totalorder %s17, 1
      %p56 = scmp.ne.s32.totalorder %s51, %s53
      %p57 = scmp.eq.s32.totalorder %s17, 0
      %p58 = por %p56, %p57
      %p59 = scmp.ne.s32.totalorder %s51, %s53
      %p60 = scmp.eq.s32.totalorder %s22, 1
      %p61 = por %p59, %p60
      %p62 = scmp.ne.s32.totalorder %s53, %s54
      %p63 = scmp.eq.s32.totalorder %s22, 0
      %p64 = por %p62, %p63
      %p65 = scmp.ne.s32.totalorder %s53, %s54
      %p66 = scmp.eq.s32.totalorder %s23, 1
      %p67 = por %p65, %p66
      %p69 = scmp.ne.s32.totalorder %s54, %s68
      %p70 = scmp.eq.s32.totalorder %s23, 0
      %p71 = por %p69, %p70
      %s73 = sadd.s32 %s72, 1
      %p76 = scmp.eq.s32.totalorder %s17, 1
      %p77 = scmp.ne.s32.totalorder %s72, %s74
      %p78 = scmp.eq.s32.totalorder %s17, 0
      %p79 = por %p77, %p78
      %p80 = scmp.ne.s32.totalorder %s72, %s74
      %p81 = scmp.eq.s32.totalorder %s22, 1
      %p82 = por %p80, %p81
      %p83 = scmp.ne.s32.totalorder %s74, %s75
      %p84 = scmp.eq.s32.totalorder %s22, 0
      %p85 = por %p83, %p84
      %p86 = scmp.ne.s32.totalorder %s74, %s75
      %p87 = scmp.eq.s32.totalorder %s23, 1
      %p88 = por %p86, %p87
      %p90 = scmp.ne.s32.totalorder %s75, %s89
      %p91 = scmp.eq.s32.totalorder %s23, 0
      %p92 = por %p90, %p91
      %s94 = sadd.s32 %s93, 1
      %p97 = scmp.eq.s32.totalorder %s17, 1
      %p98 = scmp.ne.s32.totalorder %s93, %s95
      %p99 = scmp.eq.s32.totalorder %s17, 0
      %p100 = por %p98, %p99
      %p101 = scmp.ne.s32.totalorder %s93, %s95
      %p102 = scmp.eq.s32.totalorder %s22, 1
      %p103 = por %p101, %p102
      %p104 = scmp.ne.s32.totalorder %s95, %s96
      %p105 = scmp.eq.s32.totalorder %s22, 0
      %p106 = por %p104, %p105
      %p107 = scmp.ne.s32.totalorder %s95, %s96
      %p108 = scmp.eq.s32.totalorder %s23, 1
      %p109 = por %p107, %p108
      %p111 = scmp.ne.s32.totalorder %s96, %s110
      %p112 = scmp.eq.s32.totalorder %s23, 0
      %p113 = por %p111, %p112
      %s115 = sadd.s32 %s114, 1
      %p118 = scmp.eq.s32.totalorder %s17, 1
      %p119 = scmp.ne.s32.totalorder %s114, %s116
      %p120 = scmp.eq.s32.totalorder %s17, 0
      %p121 = por %p119, %p120
      %p122 = scmp.ne.s32.totalorder %s114, %s116
      %p123 = scmp.eq.s32.totalorder %s22, 1
      %p124 = por %p122, %p123
      %p125 = scmp.ne.s32.totalorder %s116, %s117
      %p126 = scmp.eq.s32.totalorder %s22, 0
      %p127 = por %p125, %p126
      %p128 = scmp.ne.s32.totalorder %s116, %s117
      %p129 = scmp.eq.s32.totalorder %s23, 1
      %p130 = por %p128, %p129
      %p132 = scmp.ne.s32.totalorder %s117, %s131
      %p133 = scmp.eq.s32.totalorder %s23, 0
      %p134 = por %p132, %p133
      %s135 = ssub.s32 %s17, %s24
      %p136 = scmp.eq.s32.totalorder %s135, 0
      %s138 = sadd.s32 %s137, 1
      %s139 = scalar_select %p136, %s137, %s138
      %p142 = pneg %p136
      %p143 = scmp.eq.s32.totalorder %s17, 1
      %p144 = por %p142, %p143
      %p145 = scmp.ne.s32.totalorder %s137, %s140
      %p146 = scmp.eq.s32.totalorder %s17, 0
      %p147 = por %p145, %p146
      %p148 = scmp.ne.s32.totalorder %s137, %s140
      %p149 = scmp.eq.s32.totalorder %s22, 1
      %p150 = por %p148, %p149
      %p151 = scmp.ne.s32.totalorder %s140, %s141
      %p152 = scmp.eq.s32.totalorder %s22, 0
      %p153 = por %p151, %p152
      %p154 = scmp.ne.s32.totalorder %s140, %s141
      %p155 = scmp.eq.s32.totalorder %s23, 1
      %p156 = por %p154, %p155
      %p158 = scmp.ne.s32.totalorder %s141, %s157
      %p159 = scmp.eq.s32.totalorder %s23, 0
      %p160 = por %p158, %p159
      %p161 = scmp.le.s32.totalorder 1, %s17
      %p162 = scmp.lt.s32.totalorder %s17, 3
      %p163 = pnand %p161, %p162
      %p164 = pneg %p163
      // Predicated region
      $region9: #{tpu_custom_call.1} parent=5 // pred_check
        _
      $region10: #{tpu_custom_call.1} parent=5 // pred_check_branch
        %166 = sbr.rel (%p163) target = $region12
      $region11: #{tpu_custom_call.1} parent=5 // pred_region
        %s167 = ssub.s32 %s17, 1
        // Predicated region
        $region13: #{tpu_custom_call.1} parent=11 // pred_check
          %p168 = pneg %p64
        $region14: #{tpu_custom_call.1} parent=11 // pred_check_branch
          %170 = sbr.rel (%p168) target = $region16
        $region15: #{tpu_custom_call.1} parent=11 // pred_region
          %s172 = ssub.s32 1280, 1280
          %173 = vsyncadd [#allocation6], %s172
          %s174 = sshll.u32 [#allocation5], 4
          %s175 = int_to_ptr.vmem [resolvable:$true] %s174
          %180 = dma.hbm_to_vmem [thread:$0]  %s1, 1280, %s175, [#allocation6], 128, 128, 8
        $region16: #{tpu_custom_call.1} parent=11 // pred_fallthru
          _
        // Predicated region
        $region17: #{tpu_custom_call.1} parent=11 // pred_check
          %p181 = pneg %p85
        $region18: #{tpu_custom_call.1} parent=11 // pred_check_branch
          %183 = sbr.rel (%p181) target = $region20
        $region19: #{tpu_custom_call.1} parent=11 // pred_region
          _
        $region20: #{tpu_custom_call.1} parent=11 // pred_fallthru
          _
        // Predicated region
        $region21: #{tpu_custom_call.1} parent=11 // pred_check
          %p184 = pneg %p106
        $region22: #{tpu_custom_call.1} parent=11 // pred_check_branch
          %186 = sbr.rel (%p184) target = $region24
        $region23: #{tpu_custom_call.1} parent=11 // pred_region
          _
        $region24: #{tpu_custom_call.1} parent=11 // pred_fallthru
          _
        // Predicated region
        $region25: #{tpu_custom_call.1} parent=11 // pred_check
          %p187 = pneg %p127
        $region26: #{tpu_custom_call.1} parent=11 // pred_check_branch
          %189 = sbr.rel (%p187) target = $region28
        $region27: #{tpu_custom_call.1} parent=11 // pred_region
          _
        $region28: #{tpu_custom_call.1} parent=11 // pred_fallthru
          _
      $region12: #{tpu_custom_call.1} parent=5 // pred_fallthru
        _
      %p190 = scmp.lt.s32.totalorder %s17, 2
      // Predicated region
      $region29: #{tpu_custom_call.1} parent=5 // pred_check
        %p191 = pneg %p190
      $region30: #{tpu_custom_call.1} parent=5 // pred_check_branch
        %193 = sbr.rel (%p191) target = $region32
      $region31: #{tpu_custom_call.1} parent=5 // pred_region
        // Predicated region
        $region33: #{tpu_custom_call.1} parent=31 // pred_check
          %p194 = pneg %p37
        $region34: #{tpu_custom_call.1} parent=31 // pred_check_branch
          %196 = sbr.rel (%p194) target = $region36
        $region35: #{tpu_custom_call.1} parent=31 // pred_region
          %s197 = sand.u32 %s27, 1
          %s198 = scalar_lea.sflag [#allocation4], %s197
          %s199 = sand.u32 %s27, 1
          %s200 = smul.addr %s199, 8
          %s201 = scalar_lea.vmem [#allocation3], %s200
          %s203 = ssub.s32 128, 128
          %204 = vsyncadd %s198, %s203
          %s205 = smul.addr %s17, 128
          %s206 = scalar_lea.hbm %s0, %s205
          %s208 = sshll.u32 %s201, 4
          %s209 = int_to_ptr.vmem [resolvable:$true] %s208
          %211 = dma.hbm_to_vmem [thread:$0]  %s206, 128, %s209, %s198
        $region36: #{tpu_custom_call.1} parent=31 // pred_fallthru
          _
      $region32: #{tpu_custom_call.1} parent=5 // pred_fallthru
        _
      %p212 = scmp.le.s32.totalorder 1, %s17
      %p213 = scmp.lt.s32.totalorder %s17, 3
      %p214 = pnand %p212, %p213
      %p215 = pneg %p214
      // Predicated region
      $region37: #{tpu_custom_call.1} parent=5 // pred_check
        _
      $region38: #{tpu_custom_call.1} parent=5 // pred_check_branch
        %217 = sbr.rel (%p214) target = $region40
      $region39: #{tpu_custom_call.1} parent=5 // pred_region
        %s218 = ssub.s32 %s17, 1
        %s219 = sand.u32 %s30, 1
        %s220 = scalar_lea.sflag [#allocation4], %s219
        %s221 = sand.u32 %s30, 1
        %s222 = smul.addr %s221, 8
        %s223 = scalar_lea.vmem [#allocation3], %s222
        // Predicated region
        $region41: #{tpu_custom_call.1} parent=39 // pred_check
          %p224 = pneg %p43
        $region42: #{tpu_custom_call.1} parent=39 // pred_check_branch
          %226 = sbr.rel (%p224) target = $region44
        $region43: #{tpu_custom_call.1} parent=39 // pred_region
          %227 = dma.done %s220, 128
        $region44: #{tpu_custom_call.1} parent=39 // pred_fallthru
          _
        // Predicated region
        $region45: #{tpu_custom_call.1} parent=39 // pred_check
          %p228 = pneg %p64
        $region46: #{tpu_custom_call.1} parent=39 // pred_check_branch
          %230 = sbr.rel (%p228) target = $region48
        $region47: #{tpu_custom_call.1} parent=39 // pred_region
          %231 = dma.done [#allocation6], 1280
        $region48: #{tpu_custom_call.1} parent=39 // pred_fallthru
          _
        %s232 = sand.u32 %s30, 1
        %s233 = scalar_lea.sflag [#allocation4], %s232
        %s234 = sand.u32 %s30, 1
        %s235 = smul.addr %s234, 8
        %s236 = scalar_lea.vmem [#allocation3], %s235
        %p237 = pneg %p43
        %p238 = pneg %p40
        %p239 = pneg %p64
        %p240 = pneg %p61
        %p241 = pneg %p85
        %p242 = pneg %p82
        %p243 = pneg %p106
        %p244 = pneg %p103
        %p245 = pneg %p127
        %p246 = pneg %p124
        %p247 = pneg %p153
        %p248 = pneg %p150
        %p249 = scmp.lt.s32.totalorder %s22, 1
        %s250 = scalar_select %p249, %s22, 1
        %s251 = smul.addr %s250, 8
        %s252 = scalar_lea.vmem %s5, %s251
        %p253 = scmp.lt.s32.totalorder %s22, 1
        %s254 = scalar_select %p253, %s22, 1
        %s255 = smul.addr %s254, 8
        %s256 = scalar_lea.vmem %s5, %s255
        %v258 = vld [vmem:[%s223] sm:$0xff]
        %v259 = vpack.c.bf16 %v258, %v258
        %v260 = vld [vmem:[#allocation5] sm:$0xff]
        %v261 = vld [vmem:[#allocation5 + $0x8] sm:$0xff]
        %v262 = vld [vmem:[#allocation5 + $0x10] sm:$0xff]
        %v263 = vld [vmem:[#allocation5 + $0x18] sm:$0xff]
        %v264 = vld [vmem:[#allocation5 + $0x20] sm:$0xff]
        %v265 = vld [vmem:[#allocation5 + $0x28] sm:$0xff]
        %v266 = vld [vmem:[#allocation5 + $0x30] sm:$0xff]
        %v267 = vld [vmem:[#allocation5 + $0x38] sm:$0xff]
        %v268 = vld [vmem:[#allocation5 + $0x40] sm:$0xff]
        %v269 = vld [vmem:[#allocation5 + $0x48] sm:$0x33]
        %v270 = vld [vmem:[%s2] sm:$0x3]
        %v272 = vlaneseq
        %v273 = vshrl.u32 %v272, 7
        %v274 = vsub.s32 0, %v273
        %v275 = vrot.slane %v270, %v274
        %v276 = vlaneseq
        %v277 = vshrl.u32 %v276, 7
        %v278 = vsub.s32 1, %v277
        %v279 = vrot.slane %v270, %v278
        %v292 = vunpack.c.l.b16 %v260
        %v293 = vunpack.c.h.b16 %v260
        %v294 = vunpack.c.l.b16 %v261
        %v295 = vunpack.c.h.b16 %v261
        %v296 = vunpack.c.l.b16 %v262
        %v297 = vunpack.c.h.b16 %v262
        %v298 = vunpack.c.l.b16 %v263
        %v299 = vunpack.c.h.b16 %v263
        %v300 = vunpack.c.l.b16 %v264
        %v301 = vunpack.c.h.b16 %v264
        %v302 = vunpack.c.l.b16 %v265
        %v303 = vunpack.c.h.b16 %v265
        %v304 = vunpack.c.l.b16 %v266
        %v305 = vunpack.c.h.b16 %v266
        %v306 = vunpack.c.l.b16 %v267
        %v307 = vunpack.c.h.b16 %v267
        %v308 = vunpack.c.l.b16 %v268
        %v309 = vunpack.c.h.b16 %v268
        %v310 = vunpack.c.l.b16 %v269
        %v311 = vunpack.c.h.b16 %v269
        %v312 = vpack.c.b16 %v294, %v292
        %v313 = vpack.c.b16 %v295, %v293
        %v314 = vpack.c.b16 %v298, %v296
        %v315 = vpack.c.b16 %v299, %v297
        %v316 = vpack.c.b16 %v302, %v300
        %v317 = vpack.c.b16 %v303, %v301
        %v318 = vpack.c.b16 %v306, %v304
        %v319 = vpack.c.b16 %v307, %v305
        %v320 = vpack.c.b16 %v310, %v308
        %v321 = vpack.c.b16 %v311, %v309
        %vm330 = vcmask 621568
        %v332 = vsel %vm330, %v259, 0
        %vm334 = vcmask 1045504
        %v336 = vsel %vm334, %v320, 0
        %v339 = vsel %vm334, %v321, 0
        %341 = vmatprep.subr.bf16.mxu0 %v313
        %342 = vmatpush1.bf16.msra.mxu0 %v312
        %343 = vmatprep.subr.bf16.mxu0 %v315
        %344 = vmatpush1.bf16.msra.mxu0 %v314
        %345 = vmatprep.subr.bf16.mxu0 %v317
        %346 = vmatpush1.bf16.msra.mxu0 %v316
        %347 = vmatprep.subr.bf16.mxu0 %v319
        %348 = vmatpush1.bf16.msra.mxu0 %v318
        %349 = vmatprep.subr.bf16.mxu0 %v339
        %350 = vmatpush1.bf16.msra.mxu0 %v336
        %351 = vmatprep.subr.bf16.mxu0 0
        %352 = vmatpush1.bf16.msra.mxu0 0
        %353 = vmatprep.subr.bf16.mxu0 0
        %354 = vmatpush1.bf16.msra.mxu0 0
        %355 = vmatprep.subr.bf16.mxu0 0
        %356 = vmatpush1.bf16.msra.mxu0 0
        %357 = vmatprep.subr.bf16.mxu0 0
        %358 = vmatpush1.bf16.msra.mxu0 0
        %359 = vmatprep.subr.bf16.mxu0 0
        %360 = vmatpush1.bf16.msra.mxu0 0
        %361 = vmatprep.subr.bf16.mxu0 0
        %362 = vmatpush1.bf16.msra.mxu0 0
        %363 = vmatprep.subr.bf16.mxu0 0
        %364 = vmatpush1.bf16.msra.mxu0 0
        %365 = vmatprep.subr.bf16.mxu0 0
        %366 = vmatpush1.bf16.msra.mxu0 0
        %367 = vmatprep.subr.bf16.mxu0 0
        %368 = vmatpush1.bf16.msra.mxu0 0
        %369 = vmatprep.subr.bf16.mxu0 0
        %370 = vmatpush1.bf16.msra.mxu0 0
        %371 = vmatprep.subr.bf16.mxu0 0
        %372 = vmatpush1.bf16.msra.mxu0 0
        %373 = vmatprep.mubr.bf16.mxu0 0
        %374 = vmatmul.mubr.bf16.gmra.mrb[0].mxu0 %v332
        %v375 = vpop.f32.mrb[0].mxu0
        %v376 = vadd.f32 %v275, %v375
        %v377 = vpop.f32.mrb[0].mxu0
        %v378 = vadd.f32 %v279, %v377
        %v379 = vpop.f32.mrb[0].mxu0
        %v380 = vpop.f32.mrb[0].mxu0
        %381 = vdwg.mxu0
        %v382 = vpack.c.bf16 %v376, %v376
        %v383 = vpack.c.bf16 %v378, %v378
        %v384 = vtanh.bf16.pop %v382
        %v385 = vtanh.bf16.pop %v383
        %v386 = vld [vmem:[%s3] sm:$0x3]
        %v389 = vunpack.c.l.s4 1966171168
        %v390 = vunpack.c.0.s8 %v389
        %v391 = vlaneseq
        %v392 = vshrl.u32 %v391, 7
        %v393 = vsub.s32 %v390, %v392
        %v394 = vrot.slane %v386, %v393
        %v395 = vcombine.high %v394, %v394
        %v397 = vunpack.c.l.s4 1966171168
        %v398 = vunpack.c.0.s8 %v397
        %v399 = vlaneseq
        %v400 = vshrl.u32 %v399, 7
        %v401 = vsub.s32 %v398, %v400
        %v402 = vrot.slane %v394, %v401
        %v404 = vunpack.c.l.s4 1966171168
        %v405 = vunpack.c.0.s8 %v404
        %v406 = vlaneseq
        %v407 = vshrl.u32 %v406, 7
        %v408 = vsub.s32 %v405, %v407
        %v409 = vrot.slane %v395, %v408
        %v411 = vpack.i.b16 %v402, %v402
        %v413 = vlaneseq
        %v414 = vshrl.u32 %v413, 7
        %v415 = vsub.s32 0, %v414
        %v416 = vrot.slane %v411, %v415
        %v418 = vpack.i.b16 %v409, %v409
        %v420 = vlaneseq
        %v421 = vshrl.u32 %v420, 7
        %v422 = vsub.s32 0, %v421
        %v423 = vrot.slane %v418, %v422
        %v424 = vmul.bf16 %v384, %v416
        %v425 = vmul.bf16 %v385, %v423
        %v426 = vunpack.c.l.bf16 %v424
        %v427 = vunpack.c.l.bf16 %v425
        %vm428 = vcmask 998400
        %v429 = vsel %vm428, %v427, 0.0
        %v430 = vadd.f32 %v426, %v429
        %431 = vadd.xlane.f32.xlu0 %v430
        %v432 = vpop.xlane.xlu0 %431
        %v433 = vld [vmem:[#allocation2] sm:$0x1]
        %v435 = vlaneseq
        %v436 = vshrl.u32 %v435, 7
        %v437 = vsub.s32 0, %v436
        %v438 = vrot.slane %v433, %v437
        %v440 = vadd.f32 %v432, %v438
        %v441 = vxor.u32 %v440, 2147483648
        %v442 = vmul.f32 %v441, 1.442695
        %v443 = vpow.pop %v442
        %v444 = vadd.f32 %v443, 1.0
        %v445 = vrcp.pop %v444
        %v446 = vmul.f32 1.0, %v445
        %vm447 = vcmask 7168
        %448 = vst.msk [vmem:[%s256] sm:$0xff] %vm447, %v446
        %p449 = scmp.lt.s32.totalorder %s22, 1
        %s450 = scalar_select %p449, %s22, 1
        %s451 = smul.addr %s450, 8
        %s452 = scalar_lea.vmem %s5, %s451
        // Predicated region
        $region49: #{tpu_custom_call.1} parent=39 // pred_check
          %p453 = pneg %p150
        $region50: #{tpu_custom_call.1} parent=39 // pred_check_branch
          %455 = sbr.rel (%p453) target = $region52
        $region51: #{tpu_custom_call.1} parent=39 // pred_region
          _
        $region52: #{tpu_custom_call.1} parent=39 // pred_fallthru
          _
      $region40: #{tpu_custom_call.1} parent=5 // pred_fallthru
        _
      %p456 = scmp.le.s32.totalorder 2, %s17
      // Predicated region
      $region53: #{tpu_custom_call.1} parent=5 // pred_check
        %p457 = pneg %p456
      $region54: #{tpu_custom_call.1} parent=5 // pred_check_branch
        %459 = sbr.rel (%p457) target = $region56
      $region55: #{tpu_custom_call.1} parent=5 // pred_region
        %s460 = ssub.s32 %s17, 2
        // Predicated region
        $region57: #{tpu_custom_call.1} parent=55 // pred_check
          %p461 = pneg %p156
        $region58: #{tpu_custom_call.1} parent=55 // pred_check_branch
          %463 = sbr.rel (%p461) target = $region60
        $region59: #{tpu_custom_call.1} parent=55 // pred_region
          %p464 = scmp.lt.s32.totalorder %s23, 1
          %s465 = scalar_select %p464, %s23, 1
          %s466 = smul.addr %s465, 8
          %s467 = scalar_lea.vmem %s5, %s466
        $region60: #{tpu_custom_call.1} parent=55 // pred_fallthru
          _
      $region56: #{tpu_custom_call.1} parent=5 // pred_fallthru
        _
    $region6: #{tpu_custom_call.1} parent=1 // loop_footer
      %s21 = sadd.s32 1, %s17
    $region7: #{tpu_custom_call.1} parent=1 // loop_footer_branch
      %16 = sbr.rel target = $region3
    $region8: #{tpu_custom_call.1} parent=1 // loop_exit
      _
    %468 = vsyncpa [#allocation4], 1
    %s469 = scalar_lea.sflag [#allocation4], 1
    %470 = vsyncpa %s469, 1
    %471 = vsyncpa [#allocation6], 1

</llo_original>
